<compile_context>
chip_gen: v5e
topology: v5e:2x2
jax: 0.10.0
libtpu: 0.0.40
codegen_flags: <defaults>
</compile_context>

<pallas_src>
import functools
import math

import jax
import jax.numpy as jnp
from jax.experimental import pallas as pl
from jax.experimental.pallas import tpu as pltpu


def graph_attention_kernel(x_ref, wqkv_ref, wo_ref, bo_ref, o_ref, *,
                           batch, nodes, heads):
    """x_ref:(B*N, D)  wqkv_ref:(3H, D, hd)  wo_ref:(H, hd, D)  bo_ref:(1, D)."""
    B, N, H = batch, nodes, heads
    BN, D = x_ref.shape
    hd = wqkv_ref.shape[-1]
    HB = H * B

    xf = x_ref[...]                                              # (BN, D)

    # ---- Fused head-major QKV projection: one batched matmul over 3H heads.
    # x is broadcast along the leading (q|k|v, head) axis only (small VMEM
    # copy, no lane/sublane relayout); weights are used directly (no B-way
    # weight broadcast).  Each matmul is (BN, D) @ (D, hd).
    xb = jnp.broadcast_to(xf, (3 * H, BN, D))
    qkv = jax.lax.dot_general(
        xb, wqkv_ref[...], (((2,), (1,)), ((0,), (0,))),
        preferred_element_type=jnp.float32)                      # (3H, BN, hd)

    # q|k|v split is a static leading-axis slice (free); the (H, BN, hd) ->
    # (H*B, N, hd) refold only touches leading / 8-aligned sublane axes.
    q = qkv[:H].reshape(HB, N, hd)          # scale folded into Wq already
    k = qkv[H:2 * H].reshape(HB, N, hd)
    v = qkv[2 * H:].reshape(HB, N, hd)

    # ---- Scaled dot-product attention, batched over (head, batch). ---------
    # Contract the last dims of q and k directly: no explicit K transpose.
    s = jax.lax.dot_general(q, k, (((2,), (2,)), ((0,), (0,))),
                            preferred_element_type=jnp.float32)  # (HB, N, N)
    s = s - jnp.max(s, axis=-1, keepdims=True)
    p = jnp.exp(s)
    p = p * pl.reciprocal(jnp.sum(p, axis=-1, keepdims=True))    # exact recip
    o = jax.lax.dot_general(p, v, (((2,), (1,)), ((0,), (0,))),
                            preferred_element_type=jnp.float32)  # (HB, N, hd)

    # ---- Output projection, accumulated across heads (no lane concat). -----
    # Batched over H only: per head (BN, hd) @ (hd, D), summed over heads ==
    # concat(heads) @ Wo.
    oh = o.reshape(H, BN, hd)
    y = jax.lax.dot_general(oh, wo_ref[...], (((2,), (1,)), ((0,), (0,))),
                            preferred_element_type=jnp.float32)  # (H, BN, D)
    y = jnp.sum(y, axis=0) + bo_ref[...]                         # (BN, D)

    o_ref[...] = y.astype(o_ref.dtype)


def graph_attention(x, wqk_t, wv_t, wo_t, bo, *, heads, head_dim):
    """x:(B,N,D), wqk_t:(D,2*inner), wv_t:(D,inner), wo_t:(inner,D), bo:(1,D)."""
    B, N, D = x.shape
    inner = heads * head_dim
    scale = head_dim ** (-0.5)

    # Head-major repack (done once, wrapper-side):
    #   Wq (scale folded in) / Wk / Wv -> (H, D, hd), stacked q|k|v on axis 0.
    wq = (wqk_t[:, :inner] * scale).reshape(D, heads, head_dim).transpose(1, 0, 2)
    wk = wqk_t[:, inner:].reshape(D, heads, head_dim).transpose(1, 0, 2)
    wv = wv_t.reshape(D, heads, head_dim).transpose(1, 0, 2)
    wqkv = jnp.concatenate([wq, wk, wv], axis=0)          # (3H, D, hd)
    wo_h = wo_t.reshape(heads, head_dim, D)               # (H, hd, D)

    x_flat = x.reshape(B * N, D)   # metadata-only in XLA; keeps the kernel 2-D

    kernel = functools.partial(graph_attention_kernel,
                               batch=B, nodes=N, heads=heads)

    flops = (2 * B * N * D * 3 * inner                # qkv projection
             + 4 * B * heads * N * N * head_dim       # scores + weighted sum
             + 2 * B * N * inner * D)                 # output projection
    transcendentals = B * heads * N * N               # exp in the softmax
    bytes_accessed = 4 * (x.size + wqkv.size + wo_h.size + bo.size + B * N * D)

    out_flat = pl.pallas_call(
        kernel,
        out_shape=jax.ShapeDtypeStruct((B * N, D), x.dtype),
        grid=(1,),
        in_specs=[
            pl.BlockSpec((B * N, D), lambda i: (0, 0)),
            pl.BlockSpec((3 * heads, D, head_dim), lambda i: (0, 0, 0)),
            pl.BlockSpec((heads, head_dim, D), lambda i: (0, 0, 0)),
            pl.BlockSpec((1, D), lambda i: (0, 0)),
        ],
        out_specs=pl.BlockSpec((B * N, D), lambda i: (0, 0)),
        compiler_params=pltpu.CompilerParams(
            dimension_semantics=("arbitrary",)),
        cost_estimate=pl.CostEstimate(
            flops=flops,
            transcendentals=transcendentals,
            bytes_accessed=bytes_accessed),
    )(x_flat, wqkv, wo_h, bo)
    return out_flat.reshape(B, N, D)


def reference(x, wqk_t, wv_t, wo_t, bo, *, heads, head_dim):
    """Pure-JAX reference mirroring the PyTorch forward."""
    B, N, D = x.shape
    inner = heads * head_dim
    qk = jnp.einsum('bnd,de->bne', x, wqk_t)
    q, k = qk[..., :inner], qk[..., inner:]
    v = jnp.einsum('bnd,de->bne', x, wv_t)
    def split(t):  # b n (h d) -> b h n d
        return t.reshape(B, N, heads, head_dim).transpose(0, 2, 1, 3)
    q, k, v = split(q), split(k), split(v)
    s = jnp.einsum('bhid,bhjd->bhij', q, k) * (head_dim ** -0.5)
    w = jax.nn.softmax(s, axis=-1)
    o = jnp.einsum('bhij,bhjd->bhid', w, v)
    o = o.transpose(0, 2, 1, 3).reshape(B, N, inner)
    return jnp.einsum('bne,ed->bnd', o, wo_t) + bo[0]


if __name__ == "__main__":
    B, N, D = 2, 16, 32          # batch, num_nodes, dim
    heads, head_dim = 4, 16      # inner_dim = 64
    inner = heads * head_dim

    key = jax.random.PRNGKey(0)
    kx, kqk, kv, kwo, kbo = jax.random.split(key, 5)

    x = jax.random.normal(kx, (B, N, D), dtype=jnp.float32)
    # nn.Linear-style deterministic init: U(-1/sqrt(fan_in), 1/sqrt(fan_in)).
    bnd_qk = 1.0 / math.sqrt(D)
    wqk_t = jax.random.uniform(kqk, (D, 2 * inner), jnp.float32, -bnd_qk, bnd_qk)
    wv_t = jax.random.uniform(kv, (D, inner), jnp.float32, -bnd_qk, bnd_qk)
    bnd_o = 1.0 / math.sqrt(inner)
    wo_t = jax.random.uniform(kwo, (inner, D), jnp.float32, -bnd_o, bnd_o)
    bo = jax.random.uniform(kbo, (1, D), jnp.float32, -bnd_o, bnd_o)

    # edge_index is accepted by the PyTorch module but never used in forward.
    out = graph_attention(x, wqk_t, wv_t, wo_t, bo,
                          heads=heads, head_dim=head_dim)
    out = jax.block_until_ready(out)

    ref = reference(x, wqk_t, wv_t, wo_t, bo, heads=heads, head_dim=head_dim)
    assert out.shape == (B, N, D)
    assert jnp.allclose(out, ref, atol=1e-5, rtol=1e-5), "mismatch vs reference"
    print("KERNEL_OK")
</pallas_src>

<mosaic_0001>
module attributes {stable_mosaic.version = 11 : i64} {
  func.func @graph_attention_kernel(%arg0: i32, %arg1: memref<32x32xf32, #tpu.memory_space<vmem>>, %arg2: memref<12x32x16xf32, #tpu.memory_space<vmem>>, %arg3: memref<4x16x32xf32, #tpu.memory_space<vmem>>, %arg4: memref<1x32xf32, #tpu.memory_space<vmem>>, %arg5: memref<32x32xf32, #tpu.memory_space<vmem>>) attributes {dimension_semantics = [#tpu.dimension_semantics<arbitrary>], iteration_bounds = array<i64: 1>, scalar_prefetch = 0 : i64, scratch_operands = 0 : i64, tpu.core_type = #tpu.core_type<tc>, window_params = [{pipeline_mode = #tpu.pipeline_mode<synchronous>, transform_indices = @transform_0, window_bounds = array<i64: 32, 32>}, {pipeline_mode = #tpu.pipeline_mode<synchronous>, transform_indices = @transform_1, window_bounds = array<i64: 12, 32, 16>}, {pipeline_mode = #tpu.pipeline_mode<synchronous>, transform_indices = @transform_2, window_bounds = array<i64: 4, 16, 32>}, {pipeline_mode = #tpu.pipeline_mode<synchronous>, transform_indices = @transform_3, window_bounds = array<i64: 1, 32>}, {pipeline_mode = #tpu.pipeline_mode<synchronous>, transform_indices = @transform_4, window_bounds = array<i64: 32, 32>}]} {
    %c0 = arith.constant 0 : index
    %c0_0 = arith.constant 0 : index
    %0 = vector.load %arg1[%c0, %c0_0] : memref<32x32xf32, #tpu.memory_space<vmem>>, vector<32x32xf32>
    %1 = vector.shape_cast %0 : vector<32x32xf32> to vector<1x32x32xf32>
    %2 = vector.broadcast %1 : vector<1x32x32xf32> to vector<12x32x32xf32>
    %c0_1 = arith.constant 0 : index
    %c0_2 = arith.constant 0 : index
    %c0_3 = arith.constant 0 : index
    %3 = vector.load %arg2[%c0_1, %c0_2, %c0_3] : memref<12x32x16xf32, #tpu.memory_space<vmem>>, vector<12x32x16xf32>
    %cst = arith.constant dense<0.000000e+00> : vector<12x32x16xf32>
    %4 = tpu.matmul %2, %3, %cst {dimension_numbers = #tpu.dot_dimension_numbers<[2], [1], [1], [2], [0, 0, 0, 1, 1, 2], [0], [0]>} : vector<12x32x32xf32>, vector<12x32x16xf32>, vector<12x32x16xf32> -> vector<12x32x16xf32>
    %5 = vector.extract_strided_slice %4 {offsets = [0, 0, 0], sizes = [4, 32, 16], strides = [1, 1, 1]} : vector<12x32x16xf32> to vector<4x32x16xf32>
    %6 = vector.shape_cast %5 : vector<4x32x16xf32> to vector<8x16x16xf32>
    %7 = vector.extract_strided_slice %4 {offsets = [4, 0, 0], sizes = [4, 32, 16], strides = [1, 1, 1]} : vector<12x32x16xf32> to vector<4x32x16xf32>
    %8 = vector.shape_cast %7 : vector<4x32x16xf32> to vector<8x16x16xf32>
    %9 = vector.extract_strided_slice %4 {offsets = [8, 0, 0], sizes = [4, 32, 16], strides = [1, 1, 1]} : vector<12x32x16xf32> to vector<4x32x16xf32>
    %10 = vector.shape_cast %9 : vector<4x32x16xf32> to vector<8x16x16xf32>
    %cst_4 = arith.constant dense<0.000000e+00> : vector<8x16x16xf32>
    %11 = tpu.matmul %6, %8, %cst_4 {dimension_numbers = #tpu.dot_dimension_numbers<[2], [2], [1], [1], [0, 0, 0, 1, 1, 1], [0], [0]>} : vector<8x16x16xf32>, vector<8x16x16xf32>, vector<8x16x16xf32> -> vector<8x16x16xf32>
    %cst_5 = arith.constant dense<0xFF800000> : vector<8x16xf32>
    %12 = vector.multi_reduction <maximumf>, %11, %cst_5 [2] : vector<8x16x16xf32> to vector<8x16xf32>
    %13 = vector.shape_cast %12 : vector<8x16xf32> to vector<8x16x1xf32>
    %14 = vector.broadcast %13 : vector<8x16x1xf32> to vector<8x16x16xf32>
    %15 = arith.subf %11, %14 : vector<8x16x16xf32>
    %16 = math.exp %15 : vector<8x16x16xf32>
    %cst_6 = arith.constant dense<0.000000e+00> : vector<8x16xf32>
    %17 = vector.multi_reduction <add>, %16, %cst_6 [2] : vector<8x16x16xf32> to vector<8x16xf32>
    %18 = vector.shape_cast %17 : vector<8x16xf32> to vector<8x16x1xf32>
    %19 = tpu.reciprocal %18 : vector<8x16x1xf32> -> vector<8x16x1xf32>
    %20 = vector.broadcast %19 : vector<8x16x1xf32> to vector<8x16x16xf32>
    %21 = arith.mulf %16, %20 : vector<8x16x16xf32>
    %cst_7 = arith.constant dense<0.000000e+00> : vector<8x16x16xf32>
    %22 = tpu.matmul %21, %10, %cst_7 {dimension_numbers = #tpu.dot_dimension_numbers<[2], [1], [1], [2], [0, 0, 0, 1, 1, 2], [0], [0]>} : vector<8x16x16xf32>, vector<8x16x16xf32>, vector<8x16x16xf32> -> vector<8x16x16xf32>
    %23 = vector.shape_cast %22 : vector<8x16x16xf32> to vector<4x32x16xf32>
    %c0_8 = arith.constant 0 : index
    %c0_9 = arith.constant 0 : index
    %c0_10 = arith.constant 0 : index
    %24 = vector.load %arg3[%c0_8, %c0_9, %c0_10] : memref<4x16x32xf32, #tpu.memory_space<vmem>>, vector<4x16x32xf32>
    %cst_11 = arith.constant dense<0.000000e+00> : vector<4x32x32xf32>
    %25 = tpu.matmul %23, %24, %cst_11 {dimension_numbers = #tpu.dot_dimension_numbers<[2], [1], [1], [2], [0, 0, 0, 1, 1, 2], [0], [0]>} : vector<4x32x16xf32>, vector<4x16x32xf32>, vector<4x32x32xf32> -> vector<4x32x32xf32>
    %cst_12 = arith.constant dense<0.000000e+00> : vector<32x32xf32>
    %26 = vector.multi_reduction <add>, %25, %cst_12 [0] : vector<4x32x32xf32> to vector<32x32xf32>
    %c0_13 = arith.constant 0 : index
    %c0_14 = arith.constant 0 : index
    %27 = vector.load %arg4[%c0_13, %c0_14] : memref<1x32xf32, #tpu.memory_space<vmem>>, vector<1x32xf32>
    %28 = vector.broadcast %27 : vector<1x32xf32> to vector<32x32xf32>
    %29 = arith.addf %26, %28 : vector<32x32xf32>
    %c0_15 = arith.constant 0 : index
    %c0_16 = arith.constant 0 : index
    %30 = vector.load %arg5[%c0_15, %c0_16] : memref<32x32xf32, #tpu.memory_space<vmem>>, vector<32x32xf32>
    tpu.vector_store %arg5[%c0_15, %c0_16], %29 {strides = array<i32>} : memref<32x32xf32, #tpu.memory_space<vmem>>, vector<32x32xf32>,
    return
  }
  func.func @transform_0(%arg0: i32) -> (i32, i32) {
    %c0_i32 = arith.constant 0 : i32
    %c0_i32_0 = arith.constant 0 : i32
    %c0_i32_1 = arith.constant 0 : i32
    return %c0_i32, %c0_i32_0 : i32, i32
  }
  func.func @transform_1(%arg0: i32) -> (i32, i32, i32) {
    %c0_i32 = arith.constant 0 : i32
    %c0_i32_0 = arith.constant 0 : i32
    %c0_i32_1 = arith.constant 0 : i32
    %c0_i32_2 = arith.constant 0 : i32
    return %c0_i32, %c0_i32_0, %c0_i32_1 : i32, i32, i32
  }
  func.func @transform_2(%arg0: i32) -> (i32, i32, i32) {
    %c0_i32 = arith.constant 0 : i32
    %c0_i32_0 = arith.constant 0 : i32
    %c0_i32_1 = arith.constant 0 : i32
    %c0_i32_2 = arith.constant 0 : i32
    return %c0_i32, %c0_i32_0, %c0_i32_1 : i32, i32, i32
  }
  func.func @transform_3(%arg0: i32) -> (i32, i32) {
    %c0_i32 = arith.constant 0 : i32
    %c0_i32_0 = arith.constant 0 : i32
    %c0_i32_1 = arith.constant 0 : i32
    return %c0_i32, %c0_i32_0 : i32, i32
  }
  func.func @transform_4(%arg0: i32) -> (i32, i32) {
    %c0_i32 = arith.constant 0 : i32
    %c0_i32_0 = arith.constant 0 : i32
    %c0_i32_1 = arith.constant 0 : i32
    return %c0_i32, %c0_i32_0 : i32, i32
  }
}

</mosaic_0001>

<llo_original>
// kernel: tpu_custom_call.1
$region0: #{tpu_custom_call.1}
  #allocation0 [shape = 'u32[]', space=smem, size = 0x4, offset = 0x4, fixed_abs, tag = 'smem constant byte address 0x4 - core index']
  #allocation1 [shape = 'u32[72,128]{1,0:T(1,128)}', space=vmem, size = 0x9000, scoped, tag = 'internal scratch']
  %s0 = inlined_call_operand.vmem [shape: f32[32,32], index: 0, kind: input, shape index: {}]
  %s1 = inlined_call_operand.vmem [shape: f32[12,32,16], index: 1, kind: input, shape index: {}]
  %s2 = inlined_call_operand.vmem [shape: f32[4,16,32], index: 2, kind: input, shape index: {}]
  %s3 = inlined_call_operand.vmem [shape: f32[1,32], index: 3, kind: input, shape index: {}]
  %s4 = inlined_call_operand.hbm [shape: f32[32,32], index: 4, kind: output, shape index: {}]
  %s5 = sld [smem:[#allocation0]]
  $region26: #{tpu_custom_call.1} parent=0
    _
  %s7 = ssub.s32 1, %s5
  %s8 = scalar_select 0, %s7, %s5
  $region1: #{tpu_custom_call.1} parent=0
    #allocation2 [shape = 'u8[16384]{0}', space=vmem, size = 0x4000, scoped, tag = 'output window, operand 0, single buffered']
    #allocation3 [shape = 's32[1]{0}', space=sflag, size = 0x4, scoped, tag = 'scoped memory for tpu_custom_call.1']
    %9 = vsyncpa [#allocation3], 0
    // Predicated region
    $region2: #{tpu_custom_call.1} parent=1 // pred_check
      _
    $region3: #{tpu_custom_call.1} parent=1 // pred_check_branch
      %11 = sbr.rel (0) target = $region5
    $region4: #{tpu_custom_call.1} parent=1 // pred_region
      _
    $region5: #{tpu_custom_call.1} parent=1 // pred_fallthru
      _
    // Predicated region
    $region6: #{tpu_custom_call.1} parent=1 // pred_check
      _
    $region7: #{tpu_custom_call.1} parent=1 // pred_check_branch
      %13 = sbr.rel (0) target = $region9
    $region8: #{tpu_custom_call.1} parent=1 // pred_region
      _
    $region9: #{tpu_custom_call.1} parent=1 // pred_fallthru
      _
    // Predicated region
    $region10: #{tpu_custom_call.1} parent=1 // pred_check
      _
    $region11: #{tpu_custom_call.1} parent=1 // pred_check_branch
      %15 = sbr.rel (0) target = $region13
    $region12: #{tpu_custom_call.1} parent=1 // pred_region
      _
    $region13: #{tpu_custom_call.1} parent=1 // pred_fallthru
      _
    // Predicated region
    $region14: #{tpu_custom_call.1} parent=1 // pred_check
      _
    $region15: #{tpu_custom_call.1} parent=1 // pred_check_branch
      %17 = sbr.rel (0) target = $region17
    $region16: #{tpu_custom_call.1} parent=1 // pred_region
      _
    $region17: #{tpu_custom_call.1} parent=1 // pred_fallthru
      _
    %v18 = vld [vmem:[%s0] sm:$0xff]
    %v19 = vld [vmem:[%s0 + $0x8] sm:$0xff]
    %v20 = vld [vmem:[%s0 + $0x10] sm:$0xff]
    %v21 = vld [vmem:[%s0 + $0x18] sm:$0xff]
    %v22 = vld [vmem:[%s1] sm:$0xff]
    %v23 = vld [vmem:[%s1 + $0x8] sm:$0xff]
    %v24 = vld [vmem:[%s1 + $0x10] sm:$0xff]
    %v25 = vld [vmem:[%s1 + $0x18] sm:$0xff]
    %v26 = vld [vmem:[%s1 + $0x20] sm:$0xff]
    %v27 = vld [vmem:[%s1 + $0x28] sm:$0xff]
    %v28 = vld [vmem:[%s1 + $0x30] sm:$0xff]
    %v29 = vld [vmem:[%s1 + $0x38] sm:$0xff]
    %v30 = vld [vmem:[%s1 + $0x40] sm:$0xff]
    %v31 = vld [vmem:[%s1 + $0x48] sm:$0xff]
    %v32 = vld [vmem:[%s1 + $0x50] sm:$0xff]
    %v33 = vld [vmem:[%s1 + $0x58] sm:$0xff]
    %v34 = vld [vmem:[%s1 + $0x60] sm:$0xff]
    %v35 = vld [vmem:[%s1 + $0x68] sm:$0xff]
    %v36 = vld [vmem:[%s1 + $0x70] sm:$0xff]
    %v37 = vld [vmem:[%s1 + $0x78] sm:$0xff]
    %v38 = vld [vmem:[%s1 + $0x80] sm:$0xff]
    %v39 = vld [vmem:[%s1 + $0x88] sm:$0xff]
    %v40 = vld [vmem:[%s1 + $0x90] sm:$0xff]
    %v41 = vld [vmem:[%s1 + $0x98] sm:$0xff]
    %v42 = vld [vmem:[%s1 + $0xa0] sm:$0xff]
    %v43 = vld [vmem:[%s1 + $0xa8] sm:$0xff]
    %v44 = vld [vmem:[%s1 + $0xb0] sm:$0xff]
    %v45 = vld [vmem:[%s1 + $0xb8] sm:$0xff]
    %v46 = vld [vmem:[%s1 + $0xc0] sm:$0xff]
    %v47 = vld [vmem:[%s1 + $0xc8] sm:$0xff]
    %v48 = vld [vmem:[%s1 + $0xd0] sm:$0xff]
    %v49 = vld [vmem:[%s1 + $0xd8] sm:$0xff]
    %v50 = vld [vmem:[%s1 + $0xe0] sm:$0xff]
    %v51 = vld [vmem:[%s1 + $0xe8] sm:$0xff]
    %v52 = vld [vmem:[%s1 + $0xf0] sm:$0xff]
    %v53 = vld [vmem:[%s1 + $0xf8] sm:$0xff]
    %v54 = vld [vmem:[%s1 + $0x100] sm:$0xff]
    %v55 = vld [vmem:[%s1 + $0x108] sm:$0xff]
    %v56 = vld [vmem:[%s1 + $0x110] sm:$0xff]
    %v57 = vld [vmem:[%s1 + $0x118] sm:$0xff]
    %v58 = vld [vmem:[%s1 + $0x120] sm:$0xff]
    %v59 = vld [vmem:[%s1 + $0x128] sm:$0xff]
    %v60 = vld [vmem:[%s1 + $0x130] sm:$0xff]
    %v61 = vld [vmem:[%s1 + $0x138] sm:$0xff]
    %v62 = vld [vmem:[%s1 + $0x140] sm:$0xff]
    %v63 = vld [vmem:[%s1 + $0x148] sm:$0xff]
    %v64 = vld [vmem:[%s1 + $0x150] sm:$0xff]
    %v65 = vld [vmem:[%s1 + $0x158] sm:$0xff]
    %v66 = vld [vmem:[%s1 + $0x160] sm:$0xff]
    %v67 = vld [vmem:[%s1 + $0x168] sm:$0xff]
    %v68 = vld [vmem:[%s1 + $0x170] sm:$0xff]
    %v69 = vld [vmem:[%s1 + $0x178] sm:$0xff]
    %vm70 = vcmask 261120
    %v72 = vsel %vm70, %v18, 0
    %v75 = vsel %vm70, %v19, 0
    %v78 = vsel %vm70, %v20, 0
    %v81 = vsel %vm70, %v21, 0
    %83 = vmatpush.msra.mxu0 0.0
    %84 = vmatpush.msra.mxu0 0.0
    %85 = vmatpush.msra.mxu0 0.0
    %86 = vmatpush.msra.mxu0 0.0
    %87 = vmatpush.msra.mxu0 0.0
    %88 = vmatpush.msra.mxu0 0.0
    %89 = vmatpush.msra.mxu0 0.0
    %90 = vmatpush.msra.mxu0 0.0
    %91 = vmatpush.msra.mxu0 0.0
    %92 = vmatpush.msra.mxu0 0.0
    %93 = vmatpush.msra.mxu0 0.0
    %94 = vmatpush.msra.mxu0 0.0
    %95 = vmatpush.msra.mxu0 %v25
    %96 = vmatpush.msra.mxu0 %v24
    %97 = vmatpush.msra.mxu0 %v23
    %98 = vmatpush.msra.mxu0 %v22
    %99 = vmatmul.f32.gmra.mxu0 %v72
    %v100 = vpop.f32.mrf.mxu0
    %v101 = vadd.f32 0.0, %v100
    %102 = vmatmul.f32.gmra.mxu0 %v75
    %v103 = vpop.f32.mrf.mxu0
    %v104 = vadd.f32 0.0, %v103
    %105 = vmatmul.f32.gmra.mxu0 %v78
    %v106 = vpop.f32.mrf.mxu0
    %v107 = vadd.f32 0.0, %v106
    %108 = vmatmul.f32.gmra.mxu0 %v81
    %v109 = vpop.f32.mrf.mxu0
    %v110 = vadd.f32 0.0, %v109
    %111 = vdwg.mxu0
    %112 = vmatpush.msra.mxu0 0.0
    %113 = vmatpush.msra.mxu0 0.0
    %114 = vmatpush.msra.mxu0 0.0
    %115 = vmatpush.msra.mxu0 0.0
    %116 = vmatpush.msra.mxu0 0.0
    %117 = vmatpush.msra.mxu0 0.0
    %118 = vmatpush.msra.mxu0 0.0
    %119 = vmatpush.msra.mxu0 0.0
    %120 = vmatpush.msra.mxu0 0.0
    %121 = vmatpush.msra.mxu0 0.0
    %122 = vmatpush.msra.mxu0 0.0
    %123 = vmatpush.msra.mxu0 0.0
    %124 = vmatpush.msra.mxu0 %v29
    %125 = vmatpush.msra.mxu0 %v28
    %126 = vmatpush.msra.mxu0 %v27
    %127 = vmatpush.msra.mxu0 %v26
    %128 = vmatmul.f32.gmra.mxu0 %v72
    %v129 = vpop.f32.mrf.mxu0
    %v130 = vadd.f32 0.0, %v129
    %131 = vmatmul.f32.gmra.mxu0 %v75
    %v132 = vpop.f32.mrf.mxu0
    %v133 = vadd.f32 0.0, %v132
    %134 = vmatmul.f32.gmra.mxu0 %v78
    %v135 = vpop.f32.mrf.mxu0
    %v136 = vadd.f32 0.0, %v135
    %137 = vmatmul.f32.gmra.mxu0 %v81
    %v138 = vpop.f32.mrf.mxu0
    %v139 = vadd.f32 0.0, %v138
    %140 = vdwg.mxu0
    %141 = vmatpush.msra.mxu0 0.0
    %142 = vmatpush.msra.mxu0 0.0
    %143 = vmatpush.msra.mxu0 0.0
    %144 = vmatpush.msra.mxu0 0.0
    %145 = vmatpush.msra.mxu0 0.0
    %146 = vmatpush.msra.mxu0 0.0
    %147 = vmatpush.msra.mxu0 0.0
    %148 = vmatpush.msra.mxu0 0.0
    %149 = vmatpush.msra.mxu0 0.0
    %150 = vmatpush.msra.mxu0 0.0
    %151 = vmatpush.msra.mxu0 0.0
    %152 = vmatpush.msra.mxu0 0.0
    %153 = vmatpush.msra.mxu0 %v33
    %154 = vmatpush.msra.mxu0 %v32
    %155 = vmatpush.msra.mxu0 %v31
    %156 = vmatpush.msra.mxu0 %v30
    %157 = vmatmul.f32.gmra.mxu0 %v72
    %v158 = vpop.f32.mrf.mxu0
    %v159 = vadd.f32 0.0, %v158
    %160 = vmatmul.f32.gmra.mxu0 %v75
    %v161 = vpop.f32.mrf.mxu0
    %v162 = vadd.f32 0.0, %v161
    %163 = vmatmul.f32.gmra.mxu0 %v78
    %v164 = vpop.f32.mrf.mxu0
    %v165 = vadd.f32 0.0, %v164
    %166 = vmatmul.f32.gmra.mxu0 %v81
    %v167 = vpop.f32.mrf.mxu0
    %v168 = vadd.f32 0.0, %v167
    %169 = vdwg.mxu0
    %170 = vmatpush.msra.mxu0 0.0
    %171 = vmatpush.msra.mxu0 0.0
    %172 = vmatpush.msra.mxu0 0.0
    %173 = vmatpush.msra.mxu0 0.0
    %174 = vmatpush.msra.mxu0 0.0
    %175 = vmatpush.msra.mxu0 0.0
    %176 = vmatpush.msra.mxu0 0.0
    %177 = vmatpush.msra.mxu0 0.0
    %178 = vmatpush.msra.mxu0 0.0
    %179 = vmatpush.msra.mxu0 0.0
    %180 = vmatpush.msra.mxu0 0.0
    %181 = vmatpush.msra.mxu0 0.0
    %182 = vmatpush.msra.mxu0 %v37
    %183 = vmatpush.msra.mxu0 %v36
    %184 = vmatpush.msra.mxu0 %v35
    %185 = vmatpush.msra.mxu0 %v34
    %186 = vmatmul.f32.gmra.mxu0 %v72
    %v187 = vpop.f32.mrf.mxu0
    %v188 = vadd.f32 0.0, %v187
    %189 = vmatmul.f32.gmra.mxu0 %v75
    %v190 = vpop.f32.mrf.mxu0
    %v191 = vadd.f32 0.0, %v190
    %192 = vmatmul.f32.gmra.mxu0 %v78
    %v193 = vpop.f32.mrf.mxu0
    %v194 = vadd.f32 0.0, %v193
    %195 = vmatmul.f32.gmra.mxu0 %v81
    %v196 = vpop.f32.mrf.mxu0
    %v197 = vadd.f32 0.0, %v196
    %198 = vdwg.mxu0
    %199 = vmatpush.msra.mxu0 0.0
    %200 = vmatpush.msra.mxu0 0.0
    %201 = vmatpush.msra.mxu0 0.0
    %202 = vmatpush.msra.mxu0 0.0
    %203 = vmatpush.msra.mxu0 0.0
    %204 = vmatpush.msra.mxu0 0.0
    %205 = vmatpush.msra.mxu0 0.0
    %206 = vmatpush.msra.mxu0 0.0
    %207 = vmatpush.msra.mxu0 0.0
    %208 = vmatpush.msra.mxu0 0.0
    %209 = vmatpush.msra.mxu0 0.0
    %210 = vmatpush.msra.mxu0 0.0
    %211 = vmatpush.msra.mxu0 %v41
    %212 = vmatpush.msra.mxu0 %v40
    %213 = vmatpush.msra.mxu0 %v39
    %214 = vmatpush.msra.mxu0 %v38
    %215 = vmatmul.f32.gmra.mxu0 %v72
    %v216 = vpop.f32.mrf.mxu0
    %v217 = vadd.f32 0.0, %v216
    %218 = vmatmul.f32.gmra.mxu0 %v75
    %v219 = vpop.f32.mrf.mxu0
    %v220 = vadd.f32 0.0, %v219
    %221 = vmatmul.f32.gmra.mxu0 %v78
    %v222 = vpop.f32.mrf.mxu0
    %v223 = vadd.f32 0.0, %v222
    %224 = vmatmul.f32.gmra.mxu0 %v81
    %v225 = vpop.f32.mrf.mxu0
    %v226 = vadd.f32 0.0, %v225
    %227 = vdwg.mxu0
    %228 = vmatpush.msra.mxu0 0.0
    %229 = vmatpush.msra.mxu0 0.0
    %230 = vmatpush.msra.mxu0 0.0
    %231 = vmatpush.msra.mxu0 0.0
    %232 = vmatpush.msra.mxu0 0.0
    %233 = vmatpush.msra.mxu0 0.0
    %234 = vmatpush.msra.mxu0 0.0
    %235 = vmatpush.msra.mxu0 0.0
    %236 = vmatpush.msra.mxu0 0.0
    %237 = vmatpush.msra.mxu0 0.0
    %238 = vmatpush.msra.mxu0 0.0
    %239 = vmatpush.msra.mxu0 0.0
    %240 = vmatpush.msra.mxu0 %v45
    %241 = vmatpush.msra.mxu0 %v44
    %242 = vmatpush.msra.mxu0 %v43
    %243 = vmatpush.msra.mxu0 %v42
    %244 = vmatmul.f32.gmra.mxu0 %v72
    %v245 = vpop.f32.mrf.mxu0
    %v246 = vadd.f32 0.0, %v245
    %247 = vmatmul.f32.gmra.mxu0 %v75
    %v248 = vpop.f32.mrf.mxu0
    %v249 = vadd.f32 0.0, %v248
    %250 = vmatmul.f32.gmra.mxu0 %v78
    %v251 = vpop.f32.mrf.mxu0
    %v252 = vadd.f32 0.0, %v251
    %253 = vmatmul.f32.gmra.mxu0 %v81
    %v254 = vpop.f32.mrf.mxu0
    %v255 = vadd.f32 0.0, %v254
    %256 = vdwg.mxu0
    %257 = vmatpush.msra.mxu0 0.0
    %258 = vmatpush.msra.mxu0 0.0
    %259 = vmatpush.msra.mxu0 0.0
    %260 = vmatpush.msra.mxu0 0.0
    %261 = vmatpush.msra.mxu0 0.0
    %262 = vmatpush.msra.mxu0 0.0
    %263 = vmatpush.msra.mxu0 0.0
    %264 = vmatpush.msra.mxu0 0.0
    %265 = vmatpush.msra.mxu0 0.0
    %266 = vmatpush.msra.mxu0 0.0
    %267 = vmatpush.msra.mxu0 0.0
    %268 = vmatpush.msra.mxu0 0.0
    %269 = vmatpush.msra.mxu0 %v49
    %270 = vmatpush.msra.mxu0 %v48
    %271 = vmatpush.msra.mxu0 %v47
    %272 = vmatpush.msra.mxu0 %v46
    %273 = vmatmul.f32.gmra.mxu0 %v72
    %v274 = vpop.f32.mrf.mxu0
    %v275 = vadd.f32 0.0, %v274
    %276 = vmatmul.f32.gmra.mxu0 %v75
    %v277 = vpop.f32.mrf.mxu0
    %v278 = vadd.f32 0.0, %v277
    %279 = vmatmul.f32.gmra.mxu0 %v78
    %v280 = vpop.f32.mrf.mxu0
    %v281 = vadd.f32 0.0, %v280
    %282 = vmatmul.f32.gmra.mxu0 %v81
    %v283 = vpop.f32.mrf.mxu0
    %v284 = vadd.f32 0.0, %v283
    %285 = vdwg.mxu0
    %286 = vmatpush.msra.mxu0 0.0
    %287 = vmatpush.msra.mxu0 0.0
    %288 = vmatpush.msra.mxu0 0.0
    %289 = vmatpush.msra.mxu0 0.0
    %290 = vmatpush.msra.mxu0 0.0
    %291 = vmatpush.msra.mxu0 0.0
    %292 = vmatpush.msra.mxu0 0.0
    %293 = vmatpush.msra.mxu0 0.0
    %294 = vmatpush.msra.mxu0 0.0
    %295 = vmatpush.msra.mxu0 0.0
    %296 = vmatpush.msra.mxu0 0.0
    %297 = vmatpush.msra.mxu0 0.0
    %298 = vmatpush.msra.mxu0 %v53
    %299 = vmatpush.msra.mxu0 %v52
    %300 = vmatpush.msra.mxu0 %v51
    %301 = vmatpush.msra.mxu0 %v50
    %302 = vmatmul.f32.gmra.mxu0 %v72
    %v303 = vpop.f32.mrf.mxu0
    %v304 = vadd.f32 0.0, %v303
    %305 = vmatmul.f32.gmra.mxu0 %v75
    %v306 = vpop.f32.mrf.mxu0
    %v307 = vadd.f32 0.0, %v306
    %308 = vmatmul.f32.gmra.mxu0 %v78
    %v309 = vpop.f32.mrf.mxu0
    %v310 = vadd.f32 0.0, %v309
    %311 = vmatmul.f32.gmra.mxu0 %v81
    %v312 = vpop.f32.mrf.mxu0
    %v313 = vadd.f32 0.0, %v312
    %314 = vdwg.mxu0
    %315 = vmatpush.msra.mxu0 0.0
    %316 = vmatpush.msra.mxu0 0.0
    %317 = vmatpush.msra.mxu0 0.0
    %318 = vmatpush.msra.mxu0 0.0
    %319 = vmatpush.msra.mxu0 0.0
    %320 = vmatpush.msra.mxu0 0.0
    %321 = vmatpush.msra.mxu0 0.0
    %322 = vmatpush.msra.mxu0 0.0
    %323 = vmatpush.msra.mxu0 0.0
    %324 = vmatpush.msra.mxu0 0.0
    %325 = vmatpush.msra.mxu0 0.0
    %326 = vmatpush.msra.mxu0 0.0
    %327 = vmatpush.msra.mxu0 %v57
    %328 = vmatpush.msra.mxu0 %v56
    %329 = vmatpush.msra.mxu0 %v55
    %330 = vmatpush.msra.mxu0 %v54
    %331 = vmatmul.f32.gmra.mxu0 %v72
    %v332 = vpop.f32.mrf.mxu0
    %v333 = vadd.f32 0.0, %v332
    %334 = vmatmul.f32.gmra.mxu0 %v75
    %v335 = vpop.f32.mrf.mxu0
    %v336 = vadd.f32 0.0, %v335
    %337 = vmatmul.f32.gmra.mxu0 %v78
    %v338 = vpop.f32.mrf.mxu0
    %v339 = vadd.f32 0.0, %v338
    %340 = vmatmul.f32.gmra.mxu0 %v81
    %v341 = vpop.f32.mrf.mxu0
    %v342 = vadd.f32 0.0, %v341
    %343 = vdwg.mxu0
    %344 = vmatpush.msra.mxu0 0.0
    %345 = vmatpush.msra.mxu0 0.0
    %346 = vmatpush.msra.mxu0 0.0
    %347 = vmatpush.msra.mxu0 0.0
    %348 = vmatpush.msra.mxu0 0.0
    %349 = vmatpush.msra.mxu0 0.0
    %350 = vmatpush.msra.mxu0 0.0
    %351 = vmatpush.msra.mxu0 0.0
    %352 = vmatpush.msra.mxu0 0.0
    %353 = vmatpush.msra.mxu0 0.0
    %354 = vmatpush.msra.mxu0 0.0
    %355 = vmatpush.msra.mxu0 0.0
    %356 = vmatpush.msra.mxu0 %v61
    %357 = vmatpush.msra.mxu0 %v60
    %358 = vmatpush.msra.mxu0 %v59
    %359 = vmatpush.msra.mxu0 %v58
    %360 = vmatmul.f32.gmra.mxu0 %v72
    %v361 = vpop.f32.mrf.mxu0
    %v362 = vadd.f32 0.0, %v361
    %363 = vmatmul.f32.gmra.mxu0 %v75
    %v364 = vpop.f32.mrf.mxu0
    %v365 = vadd.f32 0.0, %v364
    %366 = vmatmul.f32.gmra.mxu0 %v78
    %v367 = vpop.f32.mrf.mxu0
    %v368 = vadd.f32 0.0, %v367
    %369 = vmatmul.f32.gmra.mxu0 %v81
    %v370 = vpop.f32.mrf.mxu0
    %v371 = vadd.f32 0.0, %v370
    %372 = vdwg.mxu0
    %373 = vmatpush.msra.mxu0 0.0
    %374 = vmatpush.msra.mxu0 0.0
    %375 = vmatpush.msra.mxu0 0.0
    %376 = vmatpush.msra.mxu0 0.0
    %377 = vmatpush.msra.mxu0 0.0
    %378 = vmatpush.msra.mxu0 0.0
    %379 = vmatpush.msra.mxu0 0.0
    %380 = vmatpush.msra.mxu0 0.0
    %381 = vmatpush.msra.mxu0 0.0
    %382 = vmatpush.msra.mxu0 0.0
    %383 = vmatpush.msra.mxu0 0.0
    %384 = vmatpush.msra.mxu0 0.0
    %385 = vmatpush.msra.mxu0 %v65
    %386 = vmatpush.msra.mxu0 %v64
    %387 = vmatpush.msra.mxu0 %v63
    %388 = vmatpush.msra.mxu0 %v62
    %389 = vmatmul.f32.gmra.mxu0 %v72
    %v390 = vpop.f32.mrf.mxu0
    %v391 = vadd.f32 0.0, %v390
    %392 = vmatmul.f32.gmra.mxu0 %v75
    %v393 = vpop.f32.mrf.mxu0
    %v394 = vadd.f32 0.0, %v393
    %395 = vmatmul.f32.gmra.mxu0 %v78
    %v396 = vpop.f32.mrf.mxu0
    %v397 = vadd.f32 0.0, %v396
    %398 = vmatmul.f32.gmra.mxu0 %v81
    %v399 = vpop.f32.mrf.mxu0
    %v400 = vadd.f32 0.0, %v399
    %401 = vdwg.mxu0
    %402 = vmatpush.msra.mxu0 0.0
    %403 = vmatpush.msra.mxu0 0.0
    %404 = vmatpush.msra.mxu0 0.0
    %405 = vmatpush.msra.mxu0 0.0
    %406 = vmatpush.msra.mxu0 0.0
    %407 = vmatpush.msra.mxu0 0.0
    %408 = vmatpush.msra.mxu0 0.0
    %409 = vmatpush.msra.mxu0 0.0
    %410 = vmatpush.msra.mxu0 0.0
    %411 = vmatpush.msra.mxu0 0.0
    %412 = vmatpush.msra.mxu0 0.0
    %413 = vmatpush.msra.mxu0 0.0
    %414 = vmatpush.msra.mxu0 %v69
    %415 = vmatpush.msra.mxu0 %v68
    %416 = vmatpush.msra.mxu0 %v67
    %417 = vmatpush.msra.mxu0 %v66
    %418 = vmatmul.f32.gmra.mxu0 %v72
    %v419 = vpop.f32.mrf.mxu0
    %v420 = vadd.f32 0.0, %v419
    %421 = vmatmul.f32.gmra.mxu0 %v75
    %v422 = vpop.f32.mrf.mxu0
    %v423 = vadd.f32 0.0, %v422
    %424 = vmatmul.f32.gmra.mxu0 %v78
    %v425 = vpop.f32.mrf.mxu0
    %v426 = vadd.f32 0.0, %v425
    %427 = vmatmul.f32.gmra.mxu0 %v81
    %v428 = vpop.f32.mrf.mxu0
    %v429 = vadd.f32 0.0, %v428
    %430 = vdwg.mxu0
    %vm431 = vcmask 130048
    %v433 = vsel %vm431, %v101, 0
    %v436 = vsel %vm431, %v104, 0
    %v439 = vsel %vm431, %v217, 0
    %v442 = vsel %vm431, %v220, 0
    %444 = vmatpush.xpose.msra.mxu0 0.0
    %445 = vmatpush.xpose.msra.mxu0 0.0
    %446 = vmatpush.xpose.msra.mxu0 0.0
    %447 = vmatpush.xpose.msra.mxu0 0.0
    %448 = vmatpush.xpose.msra.mxu0 0.0
    %449 = vmatpush.xpose.msra.mxu0 0.0
    %450 = vmatpush.xpose.msra.mxu0 0.0
    %451 = vmatpush.xpose.msra.mxu0 0.0
    %452 = vmatpush.xpose.msra.mxu0 0.0
    %453 = vmatpush.xpose.msra.mxu0 0.0
    %454 = vmatpush.xpose.msra.mxu0 0.0
    %455 = vmatpush.xpose.msra.mxu0 0.0
    %456 = vmatpush.xpose.msra.mxu0 0.0
    %457 = vmatpush.xpose.msra.mxu0 0.0
    %458 = vmatpush.xpose.msra.mxu0 %v442
    %459 = vmatpush.xpose.msra.mxu0 %v439
    %460 = vmatmul.f32.gmra.mxu0 %v433
    %v461 = vpop.f32.mrf.mxu0
    %v462 = vadd.f32 0.0, %v461
    %463 = vmatmul.f32.gmra.mxu0 %v436
    %v464 = vpop.f32.mrf.mxu0
    %v465 = vadd.f32 0.0, %v464
    %466 = vdwg.mxu0
    %v468 = vsel %vm431, %v107, 0
    %v471 = vsel %vm431, %v110, 0
    %v474 = vsel %vm431, %v223, 0
    %v477 = vsel %vm431, %v226, 0
    %479 = vmatpush.xpose.msra.mxu0 0.0
    %480 = vmatpush.xpose.msra.mxu0 0.0
    %481 = vmatpush.xpose.msra.mxu0 0.0
    %482 = vmatpush.xpose.msra.mxu0 0.0
    %483 = vmatpush.xpose.msra.mxu0 0.0
    %484 = vmatpush.xpose.msra.mxu0 0.0
    %485 = vmatpush.xpose.msra.mxu0 0.0
    %486 = vmatpush.xpose.msra.mxu0 0.0
    %487 = vmatpush.xpose.msra.mxu0 0.0
    %488 = vmatpush.xpose.msra.mxu0 0.0
    %489 = vmatpush.xpose.msra.mxu0 0.0
    %490 = vmatpush.xpose.msra.mxu0 0.0
    %491 = vmatpush.xpose.msra.mxu0 0.0
    %492 = vmatpush.xpose.msra.mxu0 0.0
    %493 = vmatpush.xpose.msra.mxu0 %v477
    %494 = vmatpush.xpose.msra.mxu0 %v474
    %495 = vmatmul.f32.gmra.mxu0 %v468
    %v496 = vpop.f32.mrf.mxu0
    %v497 = vadd.f32 0.0, %v496
    %498 = vmatmul.f32.gmra.mxu0 %v471
    %v499 = vpop.f32.mrf.mxu0
    %v500 = vadd.f32 0.0, %v499
    %501 = vdwg.mxu0
    %v503 = vsel %vm431, %v130, 0
    %v506 = vsel %vm431, %v133, 0
    %v509 = vsel %vm431, %v246, 0
    %v512 = vsel %vm431, %v249, 0
    %514 = vmatpush.xpose.msra.mxu0 0.0
    %515 = vmatpush.xpose.msra.mxu0 0.0
    %516 = vmatpush.xpose.msra.mxu0 0.0
    %517 = vmatpush.xpose.msra.mxu0 0.0
    %518 = vmatpush.xpose.msra.mxu0 0.0
    %519 = vmatpush.xpose.msra.mxu0 0.0
    %520 = vmatpush.xpose.msra.mxu0 0.0
    %521 = vmatpush.xpose.msra.mxu0 0.0
    %522 = vmatpush.xpose.msra.mxu0 0.0
    %523 = vmatpush.xpose.msra.mxu0 0.0
    %524 = vmatpush.xpose.msra.mxu0 0.0
    %525 = vmatpush.xpose.msra.mxu0 0.0
    %526 = vmatpush.xpose.msra.mxu0 0.0
    %527 = vmatpush.xpose.msra.mxu0 0.0
    %528 = vmatpush.xpose.msra.mxu0 %v512
    %529 = vmatpush.xpose.msra.mxu0 %v509
    %530 = vmatmul.f32.gmra.mxu0 %v503
    %v531 = vpop.f32.mrf.mxu0
    %v532 = vadd.f32 0.0, %v531
    %533 = vmatmul.f32.gmra.mxu0 %v506
    %v534 = vpop.f32.mrf.mxu0
    %v535 = vadd.f32 0.0, %v534
    %536 = vdwg.mxu0
    %v538 = vsel %vm431, %v136, 0
    %v541 = vsel %vm431, %v139, 0
    %v544 = vsel %vm431, %v252, 0
    %v547 = vsel %vm431, %v255, 0
    %549 = vmatpush.xpose.msra.mxu0 0.0
    %550 = vmatpush.xpose.msra.mxu0 0.0
    %551 = vmatpush.xpose.msra.mxu0 0.0
    %552 = vmatpush.xpose.msra.mxu0 0.0
    %553 = vmatpush.xpose.msra.mxu0 0.0
    %554 = vmatpush.xpose.msra.mxu0 0.0
    %555 = vmatpush.xpose.msra.mxu0 0.0
    %556 = vmatpush.xpose.msra.mxu0 0.0
    %557 = vmatpush.xpose.msra.mxu0 0.0
    %558 = vmatpush.xpose.msra.mxu0 0.0
    %559 = vmatpush.xpose.msra.mxu0 0.0
    %560 = vmatpush.xpose.msra.mxu0 0.0
    %561 = vmatpush.xpose.msra.mxu0 0.0
    %562 = vmatpush.xpose.msra.mxu0 0.0
    %563 = vmatpush.xpose.msra.mxu0 %v547
    %564 = vmatpush.xpose.msra.mxu0 %v544
    %565 = vmatmul.f32.gmra.mxu0 %v538
    %v566 = vpop.f32.mrf.mxu0
    %v567 = vadd.f32 0.0, %v566
    %568 = vmatmul.f32.gmra.mxu0 %v541
    %v569 = vpop.f32.mrf.mxu0
    %v570 = vadd.f32 0.0, %v569
    %571 = vdwg.mxu0
    %v573 = vsel %vm431, %v159, 0
    %v576 = vsel %vm431, %v162, 0
    %v579 = vsel %vm431, %v275, 0
    %v582 = vsel %vm431, %v278, 0
    %584 = vmatpush.xpose.msra.mxu0 0.0
    %585 = vmatpush.xpose.msra.mxu0 0.0
    %586 = vmatpush.xpose.msra.mxu0 0.0
    %587 = vmatpush.xpose.msra.mxu0 0.0
    %588 = vmatpush.xpose.msra.mxu0 0.0
    %589 = vmatpush.xpose.msra.mxu0 0.0
    %590 = vmatpush.xpose.msra.mxu0 0.0
    %591 = vmatpush.xpose.msra.mxu0 0.0
    %592 = vmatpush.xpose.msra.mxu0 0.0
    %593 = vmatpush.xpose.msra.mxu0 0.0
    %594 = vmatpush.xpose.msra.mxu0 0.0
    %595 = vmatpush.xpose.msra.mxu0 0.0
    %596 = vmatpush.xpose.msra.mxu0 0.0
    %597 = vmatpush.xpose.msra.mxu0 0.0
    %598 = vmatpush.xpose.msra.mxu0 %v582
    %599 = vmatpush.xpose.msra.mxu0 %v579
    %600 = vmatmul.f32.gmra.mxu0 %v573
    %v601 = vpop.f32.mrf.mxu0
    %v602 = vadd.f32 0.0, %v601
    %603 = vmatmul.f32.gmra.mxu0 %v576
    %v604 = vpop.f32.mrf.mxu0
    %v605 = vadd.f32 0.0, %v604
    %606 = vdwg.mxu0
    %v608 = vsel %vm431, %v165, 0
    %v611 = vsel %vm431, %v168, 0
    %v614 = vsel %vm431, %v281, 0
    %v617 = vsel %vm431, %v284, 0
    %619 = vmatpush.xpose.msra.mxu0 0.0
    %620 = vmatpush.xpose.msra.mxu0 0.0
    %621 = vmatpush.xpose.msra.mxu0 0.0
    %622 = vmatpush.xpose.msra.mxu0 0.0
    %623 = vmatpush.xpose.msra.mxu0 0.0
    %624 = vmatpush.xpose.msra.mxu0 0.0
    %625 = vmatpush.xpose.msra.mxu0 0.0
    %626 = vmatpush.xpose.msra.mxu0 0.0
    %627 = vmatpush.xpose.msra.mxu0 0.0
    %628 = vmatpush.xpose.msra.mxu0 0.0
    %629 = vmatpush.xpose.msra.mxu0 0.0
    %630 = vmatpush.xpose.msra.mxu0 0.0
    %631 = vmatpush.xpose.msra.mxu0 0.0
    %632 = vmatpush.xpose.msra.mxu0 0.0
    %633 = vmatpush.xpose.msra.mxu0 %v617
    %634 = vmatpush.xpose.msra.mxu0 %v614
    %635 = vmatmul.f32.gmra.mxu0 %v608
    %v636 = vpop.f32.mrf.mxu0
    %v637 = vadd.f32 0.0, %v636
    %638 = vmatmul.f32.gmra.mxu0 %v611
    %v639 = vpop.f32.mrf.mxu0
    %v640 = vadd.f32 0.0, %v639
    %641 = vdwg.mxu0
    %v643 = vsel %vm431, %v188, 0
    %v646 = vsel %vm431, %v191, 0
    %v649 = vsel %vm431, %v304, 0
    %v652 = vsel %vm431, %v307, 0
    %654 = vmatpush.xpose.msra.mxu0 0.0
    %655 = vmatpush.xpose.msra.mxu0 0.0
    %656 = vmatpush.xpose.msra.mxu0 0.0
    %657 = vmatpush.xpose.msra.mxu0 0.0
    %658 = vmatpush.xpose.msra.mxu0 0.0
    %659 = vmatpush.xpose.msra.mxu0 0.0
    %660 = vmatpush.xpose.msra.mxu0 0.0
    %661 = vmatpush.xpose.msra.mxu0 0.0
    %662 = vmatpush.xpose.msra.mxu0 0.0
    %663 = vmatpush.xpose.msra.mxu0 0.0
    %664 = vmatpush.xpose.msra.mxu0 0.0
    %665 = vmatpush.xpose.msra.mxu0 0.0
    %666 = vmatpush.xpose.msra.mxu0 0.0
    %667 = vmatpush.xpose.msra.mxu0 0.0
    %668 = vmatpush.xpose.msra.mxu0 %v652
    %669 = vmatpush.xpose.msra.mxu0 %v649
    %670 = vmatmul.f32.gmra.mxu0 %v643
    %v671 = vpop.f32.mrf.mxu0
    %v672 = vadd.f32 0.0, %v671
    %673 = vmatmul.f32.gmra.mxu0 %v646
    %v674 = vpop.f32.mrf.mxu0
    %v675 = vadd.f32 0.0, %v674
    %676 = vdwg.mxu0
    %v678 = vsel %vm431, %v194, 0
    %v681 = vsel %vm431, %v197, 0
    %v684 = vsel %vm431, %v310, 0
    %v687 = vsel %vm431, %v313, 0
    %689 = vmatpush.xpose.msra.mxu0 0.0
    %690 = vmatpush.xpose.msra.mxu0 0.0
    %691 = vmatpush.xpose.msra.mxu0 0.0
    %692 = vmatpush.xpose.msra.mxu0 0.0
    %693 = vmatpush.xpose.msra.mxu0 0.0
    %694 = vmatpush.xpose.msra.mxu0 0.0
    %695 = vmatpush.xpose.msra.mxu0 0.0
    %696 = vmatpush.xpose.msra.mxu0 0.0
    %697 = vmatpush.xpose.msra.mxu0 0.0
    %698 = vmatpush.xpose.msra.mxu0 0.0
    %699 = vmatpush.xpose.msra.mxu0 0.0
    %700 = vmatpush.xpose.msra.mxu0 0.0
    %701 = vmatpush.xpose.msra.mxu0 0.0
    %702 = vmatpush.xpose.msra.mxu0 0.0
    %703 = vmatpush.xpose.msra.mxu0 %v687
    %704 = vmatpush.xpose.msra.mxu0 %v684
    %705 = vmatmul.f32.gmra.mxu0 %v678
    %v706 = vpop.f32.mrf.mxu0
    %v707 = vadd.f32 0.0, %v706
    %708 = vmatmul.f32.gmra.mxu0 %v681
    %v709 = vpop.f32.mrf.mxu0
    %v710 = vadd.f32 0.0, %v709
    %711 = vdwg.mxu0
    %v712 = vsel %vm431, %v462, -inf
    %713 = vmax.xlane.f32.xlu0 %v712
    %v714 = vpop.xlane.xlu0 %713
    %v715 = vsel %vm431, %v465, -inf
    %716 = vmax.xlane.f32.xlu0 %v715
    %v717 = vpop.xlane.xlu0 %716
    %v718 = vsel %vm431, %v497, -inf
    %719 = vmax.xlane.f32.xlu0 %v718
    %v720 = vpop.xlane.xlu0 %719
    %v721 = vsel %vm431, %v500, -inf
    %722 = vmax.xlane.f32.xlu0 %v721
    %v723 = vpop.xlane.xlu0 %722
    %v724 = vsel %vm431, %v532, -inf
    %725 = vmax.xlane.f32.xlu0 %v724
    %v726 = vpop.xlane.xlu0 %725
    %v727 = vsel %vm431, %v535, -inf
    %728 = vmax.xlane.f32.xlu0 %v727
    %v729 = vpop.xlane.xlu0 %728
    %v730 = vsel %vm431, %v567, -inf
    %731 = vmax.xlane.f32.xlu0 %v730
    %v732 = vpop.xlane.xlu0 %731
    %v733 = vsel %vm431, %v570, -inf
    %734 = vmax.xlane.f32.xlu0 %v733
    %v735 = vpop.xlane.xlu0 %734
    %v736 = vsel %vm431, %v602, -inf
    %737 = vmax.xlane.f32.xlu0 %v736
    %v738 = vpop.xlane.xlu0 %737
    %v739 = vsel %vm431, %v605, -inf
    %740 = vmax.xlane.f32.xlu0 %v739
    %v741 = vpop.xlane.xlu0 %740
    %v742 = vsel %vm431, %v637, -inf
    %743 = vmax.xlane.f32.xlu0 %v742
    %v744 = vpop.xlane.xlu0 %743
    %v745 = vsel %vm431, %v640, -inf
    %746 = vmax.xlane.f32.xlu0 %v745
    %v747 = vpop.xlane.xlu0 %746
    %v748 = vsel %vm431, %v672, -inf
    %749 = vmax.xlane.f32.xlu0 %v748
    %v750 = vpop.xlane.xlu0 %749
    %v751 = vsel %vm431, %v675, -inf
    %752 = vmax.xlane.f32.xlu0 %v751
    %v753 = vpop.xlane.xlu0 %752
    %v754 = vsel %vm431, %v707, -inf
    %755 = vmax.xlane.f32.xlu0 %v754
    %v756 = vpop.xlane.xlu0 %755
    %v757 = vsel %vm431, %v710, -inf
    %758 = vmax.xlane.f32.xlu0 %v757
    %v759 = vpop.xlane.xlu0 %758
    %v760 = vsub.f32 %v462, %v714
    %v761 = vsub.f32 %v465, %v717
    %v762 = vsub.f32 %v497, %v720
    %v763 = vsub.f32 %v500, %v723
    %v764 = vsub.f32 %v532, %v726
    %v765 = vsub.f32 %v535, %v729
    %v766 = vsub.f32 %v567, %v732
    %v767 = vsub.f32 %v570, %v735
    %v768 = vsub.f32 %v602, %v738
    %v769 = vsub.f32 %v605, %v741
    %v770 = vsub.f32 %v637, %v744
    %v771 = vsub.f32 %v640, %v747
    %v772 = vsub.f32 %v672, %v750
    %v773 = vsub.f32 %v675, %v753
    %v774 = vsub.f32 %v707, %v756
    %v775 = vsub.f32 %v710, %v759
    %v776 = vmul.f32 %v760, 1.442695
    %v777 = vpow.pop %v776
    %v778 = vmul.f32 %v761, 1.442695
    %v779 = vpow.pop %v778
    %v780 = vmul.f32 %v762, 1.442695
    %v781 = vpow.pop %v780
    %v782 = vmul.f32 %v763, 1.442695
    %v783 = vpow.pop %v782
    %v784 = vmul.f32 %v764, 1.442695
    %v785 = vpow.pop %v784
    %v786 = vmul.f32 %v765, 1.442695
    %v787 = vpow.pop %v786
    %v788 = vmul.f32 %v766, 1.442695
    %v789 = vpow.pop %v788
    %v790 = vmul.f32 %v767, 1.442695
    %v791 = vpow.pop %v790
    %v792 = vmul.f32 %v768, 1.442695
    %v793 = vpow.pop %v792
    %v794 = vmul.f32 %v769, 1.442695
    %v795 = vpow.pop %v794
    %v796 = vmul.f32 %v770, 1.442695
    %v797 = vpow.pop %v796
    %v798 = vmul.f32 %v771, 1.442695
    %v799 = vpow.pop %v798
    %v800 = vmul.f32 %v772, 1.442695
    %v801 = vpow.pop %v800
    %v802 = vmul.f32 %v773, 1.442695
    %v803 = vpow.pop %v802
    %v804 = vmul.f32 %v774, 1.442695
    %v805 = vpow.pop %v804
    %v806 = vmul.f32 %v775, 1.442695
    %v807 = vpow.pop %v806
    %v808 = vsel %vm431, %v777, 0.0
    %809 = vadd.xlane.f32.xlu0 %v808
    %v810 = vpop.xlane.xlu0 %809
    %v811 = vsel %vm431, %v779, 0.0
    %812 = vadd.xlane.f32.xlu0 %v811
    %v813 = vpop.xlane.xlu0 %812
    %v814 = vsel %vm431, %v781, 0.0
    %815 = vadd.xlane.f32.xlu0 %v814
    %v816 = vpop.xlane.xlu0 %815
    %v817 = vsel %vm431, %v783, 0.0
    %818 = vadd.xlane.f32.xlu0 %v817
    %v819 = vpop.xlane.xlu0 %818
    %v820 = vsel %vm431, %v785, 0.0
    %821 = vadd.xlane.f32.xlu0 %v820
    %v822 = vpop.xlane.xlu0 %821
    %v823 = vsel %vm431, %v787, 0.0
    %824 = vadd.xlane.f32.xlu0 %v823
    %v825 = vpop.xlane.xlu0 %824
    %v826 = vsel %vm431, %v789, 0.0
    %827 = vadd.xlane.f32.xlu0 %v826
    %v828 = vpop.xlane.xlu0 %827
    %v829 = vsel %vm431, %v791, 0.0
    %830 = vadd.xlane.f32.xlu0 %v829
    %v831 = vpop.xlane.xlu0 %830
    %v832 = vsel %vm431, %v793, 0.0
    %833 = vadd.xlane.f32.xlu0 %v832
    %v834 = vpop.xlane.xlu0 %833
    %v835 = vsel %vm431, %v795, 0.0
    %836 = vadd.xlane.f32.xlu0 %v835
    %v837 = vpop.xlane.xlu0 %836
    %v838 = vsel %vm431, %v797, 0.0
    %839 = vadd.xlane.f32.xlu0 %v838
    %v840 = vpop.xlane.xlu0 %839
    %v841 = vsel %vm431, %v799, 0.0
    %842 = vadd.xlane.f32.xlu0 %v841
    %v843 = vpop.xlane.xlu0 %842
    %v844 = vsel %vm431, %v801, 0.0
    %845 = vadd.xlane.f32.xlu0 %v844
    %v846 = vpop.xlane.xlu0 %845
    %v847 = vsel %vm431, %v803, 0.0
    %848 = vadd.xlane.f32.xlu0 %v847
    %v849 = vpop.xlane.xlu0 %848
    %v850 = vsel %vm431, %v805, 0.0
    %851 = vadd.xlane.f32.xlu0 %v850
    %v852 = vpop.xlane.xlu0 %851
    %v853 = vsel %vm431, %v807, 0.0
    %854 = vadd.xlane.f32.xlu0 %v853
    %v855 = vpop.xlane.xlu0 %854
    %v856 = vrcp.pop %v810
    %v857 = vmul.f32 %v810, %v856
    %v858 = vsub.f32 1.0, %v857
    %v859 = vmul.f32 %v856, %v858
    %v860 = vadd.f32 %v856, %v859
    %vm861 = vweird.f32 %v810
    %vm862 = vweird.f32 %v856
    %vm863 = vmor %vm861, %vm862
    %v864 = vsel %vm863, %v856, %v860
    %v865 = vand.u32 2147483647, %v810
    %vm866 = vcmp.eq.f32.partialorder %v865, 8.507059e+37
    %v867 = vand.u32 %v810, 2147483648
    %v868 = vor.u32 1.1754944e-38, %v867
    %v869 = vsel %vm866, %v868, %v864
    %v870 = vrcp.pop %v813
    %v871 = vmul.f32 %v813, %v870
    %v872 = vsub.f32 1.0, %v871
    %v873 = vmul.f32 %v870, %v872
    %v874 = vadd.f32 %v870, %v873
    %vm875 = vweird.f32 %v813
    %vm876 = vweird.f32 %v870
    %vm877 = vmor %vm875, %vm876
    %v878 = vsel %vm877, %v870, %v874
    %v879 = vand.u32 2147483647, %v813
    %vm880 = vcmp.eq.f32.partialorder %v879, 8.507059e+37
    %v881 = vand.u32 %v813, 2147483648
    %v882 = vor.u32 1.1754944e-38, %v881
    %v883 = vsel %vm880, %v882, %v878
    %v884 = vrcp.pop %v816
    %v885 = vmul.f32 %v816, %v884
    %v886 = vsub.f32 1.0, %v885
    %v887 = vmul.f32 %v884, %v886
    %v888 = vadd.f32 %v884, %v887
    %vm889 = vweird.f32 %v816
    %vm890 = vweird.f32 %v884
    %vm891 = vmor %vm889, %vm890
    %v892 = vsel %vm891, %v884, %v888
    %v893 = vand.u32 2147483647, %v816
    %vm894 = vcmp.eq.f32.partialorder %v893, 8.507059e+37
    %v895 = vand.u32 %v816, 2147483648
    %v896 = vor.u32 1.1754944e-38, %v895
    %v897 = vsel %vm894, %v896, %v892
    %v898 = vrcp.pop %v819
    %v899 = vmul.f32 %v819, %v898
    %v900 = vsub.f32 1.0, %v899
    %v901 = vmul.f32 %v898, %v900
    %v902 = vadd.f32 %v898, %v901
    %vm903 = vweird.f32 %v819
    %vm904 = vweird.f32 %v898
    %vm905 = vmor %vm903, %vm904
    %v906 = vsel %vm905, %v898, %v902
    %v907 = vand.u32 2147483647, %v819
    %vm908 = vcmp.eq.f32.partialorder %v907, 8.507059e+37
    %v909 = vand.u32 %v819, 2147483648
    %v910 = vor.u32 1.1754944e-38, %v909
    %v911 = vsel %vm908, %v910, %v906
    %v912 = vrcp.pop %v822
    %v913 = vmul.f32 %v822, %v912
    %v914 = vsub.f32 1.0, %v913
    %v915 = vmul.f32 %v912, %v914
    %v916 = vadd.f32 %v912, %v915
    %vm917 = vweird.f32 %v822
    %vm918 = vweird.f32 %v912
    %vm919 = vmor %vm917, %vm918
    %v920 = vsel %vm919, %v912, %v916
    %v921 = vand.u32 2147483647, %v822
    %vm922 = vcmp.eq.f32.partialorder %v921, 8.507059e+37
    %v923 = vand.u32 %v822, 2147483648
    %v924 = vor.u32 1.1754944e-38, %v923
    %v925 = vsel %vm922, %v924, %v920
    %v926 = vrcp.pop %v825
    %v927 = vmul.f32 %v825, %v926
    %v928 = vsub.f32 1.0, %v927
    %v929 = vmul.f32 %v926, %v928
    %v930 = vadd.f32 %v926, %v929
    %vm931 = vweird.f32 %v825
    %vm932 = vweird.f32 %v926
    %vm933 = vmor %vm931, %vm932
    %v934 = vsel %vm933, %v926, %v930
    %v935 = vand.u32 2147483647, %v825
    %vm936 = vcmp.eq.f32.partialorder %v935, 8.507059e+37
    %v937 = vand.u32 %v825, 2147483648
    %v938 = vor.u32 1.1754944e-38, %v937
    %v939 = vsel %vm936, %v938, %v934
    %v940 = vrcp.pop %v828
    %v941 = vmul.f32 %v828, %v940
    %v942 = vsub.f32 1.0, %v941
    %v943 = vmul.f32 %v940, %v942
    %v944 = vadd.f32 %v940, %v943
    %vm945 = vweird.f32 %v828
    %vm946 = vweird.f32 %v940
    %vm947 = vmor %vm945, %vm946
    %v948 = vsel %vm947, %v940, %v944
    %v949 = vand.u32 2147483647, %v828
    %vm950 = vcmp.eq.f32.partialorder %v949, 8.507059e+37
    %v951 = vand.u32 %v828, 2147483648
    %v952 = vor.u32 1.1754944e-38, %v951
    %v953 = vsel %vm950, %v952, %v948
    %v954 = vrcp.pop %v831
    %v955 = vmul.f32 %v831, %v954
    %v956 = vsub.f32 1.0, %v955
    %v957 = vmul.f32 %v954, %v956
    %v958 = vadd.f32 %v954, %v957
    %vm959 = vweird.f32 %v831
    %vm960 = vweird.f32 %v954
    %vm961 = vmor %vm959, %vm960
    %v962 = vsel %vm961, %v954, %v958
    %v963 = vand.u32 2147483647, %v831
    %vm964 = vcmp.eq.f32.partialorder %v963, 8.507059e+37
    %v965 = vand.u32 %v831, 2147483648
    %v966 = vor.u32 1.1754944e-38, %v965
    %v967 = vsel %vm964, %v966, %v962
    %v968 = vrcp.pop %v834
    %v969 = vmul.f32 %v834, %v968
    %v970 = vsub.f32 1.0, %v969
    %v971 = vmul.f32 %v968, %v970
    %v972 = vadd.f32 %v968, %v971
    %vm973 = vweird.f32 %v834
    %vm974 = vweird.f32 %v968
    %vm975 = vmor %vm973, %vm974
    %v976 = vsel %vm975, %v968, %v972
    %v977 = vand.u32 2147483647, %v834
    %vm978 = vcmp.eq.f32.partialorder %v977, 8.507059e+37
    %v979 = vand.u32 %v834, 2147483648
    %v980 = vor.u32 1.1754944e-38, %v979
    %v981 = vsel %vm978, %v980, %v976
    %v982 = vrcp.pop %v837
    %v983 = vmul.f32 %v837, %v982
    %v984 = vsub.f32 1.0, %v983
    %v985 = vmul.f32 %v982, %v984
    %v986 = vadd.f32 %v982, %v985
    %vm987 = vweird.f32 %v837
    %vm988 = vweird.f32 %v982
    %vm989 = vmor %vm987, %vm988
    %v990 = vsel %vm989, %v982, %v986
    %v991 = vand.u32 2147483647, %v837
    %vm992 = vcmp.eq.f32.partialorder %v991, 8.507059e+37
    %v993 = vand.u32 %v837, 2147483648
    %v994 = vor.u32 1.1754944e-38, %v993
    %v995 = vsel %vm992, %v994, %v990
    %v996 = vrcp.pop %v840
    %v997 = vmul.f32 %v840, %v996
    %v998 = vsub.f32 1.0, %v997
    %v999 = vmul.f32 %v996, %v998
    %v1000 = vadd.f32 %v996, %v999
    %vm1001 = vweird.f32 %v840
    %vm1002 = vweird.f32 %v996
    %vm1003 = vmor %vm1001, %vm1002
    %v1004 = vsel %vm1003, %v996, %v1000
    %v1005 = vand.u32 2147483647, %v840
    %vm1006 = vcmp.eq.f32.partialorder %v1005, 8.507059e+37
    %v1007 = vand.u32 %v840, 2147483648
    %v1008 = vor.u32 1.1754944e-38, %v1007
    %v1009 = vsel %vm1006, %v1008, %v1004
    %v1010 = vrcp.pop %v843
    %v1011 = vmul.f32 %v843, %v1010
    %v1012 = vsub.f32 1.0, %v1011
    %v1013 = vmul.f32 %v1010, %v1012
    %v1014 = vadd.f32 %v1010, %v1013
    %vm1015 = vweird.f32 %v843
    %vm1016 = vweird.f32 %v1010
    %vm1017 = vmor %vm1015, %vm1016
    %v1018 = vsel %vm1017, %v1010, %v1014
    %v1019 = vand.u32 2147483647, %v843
    %vm1020 = vcmp.eq.f32.partialorder %v1019, 8.507059e+37
    %v1021 = vand.u32 %v843, 2147483648
    %v1022 = vor.u32 1.1754944e-38, %v1021
    %v1023 = vsel %vm1020, %v1022, %v1018
    %v1024 = vrcp.pop %v846
    %v1025 = vmul.f32 %v846, %v1024
    %v1026 = vsub.f32 1.0, %v1025
    %v1027 = vmul.f32 %v1024, %v1026
    %v1028 = vadd.f32 %v1024, %v1027
    %vm1029 = vweird.f32 %v846
    %vm1030 = vweird.f32 %v1024
    %vm1031 = vmor %vm1029, %vm1030
    %v1032 = vsel %vm1031, %v1024, %v1028
    %v1033 = vand.u32 2147483647, %v846
    %vm1034 = vcmp.eq.f32.partialorder %v1033, 8.507059e+37
    %v1035 = vand.u32 %v846, 2147483648
    %v1036 = vor.u32 1.1754944e-38, %v1035
    %v1037 = vsel %vm1034, %v1036, %v1032
    %v1038 = vrcp.pop %v849
    %v1039 = vmul.f32 %v849, %v1038
    %v1040 = vsub.f32 1.0, %v1039
    %v1041 = vmul.f32 %v1038, %v1040
    %v1042 = vadd.f32 %v1038, %v1041
    %vm1043 = vweird.f32 %v849
    %vm1044 = vweird.f32 %v1038
    %vm1045 = vmor %vm1043, %vm1044
    %v1046 = vsel %vm1045, %v1038, %v1042
    %v1047 = vand.u32 2147483647, %v849
    %vm1048 = vcmp.eq.f32.partialorder %v1047, 8.507059e+37
    %v1049 = vand.u32 %v849, 2147483648
    %v1050 = vor.u32 1.1754944e-38, %v1049
    %v1051 = vsel %vm1048, %v1050, %v1046
    %v1052 = vrcp.pop %v852
    %v1053 = vmul.f32 %v852, %v1052
    %v1054 = vsub.f32 1.0, %v1053
    %v1055 = vmul.f32 %v1052, %v1054
    %v1056 = vadd.f32 %v1052, %v1055
    %vm1057 = vweird.f32 %v852
    %vm1058 = vweird.f32 %v1052
    %vm1059 = vmor %vm1057, %vm1058
    %v1060 = vsel %vm1059, %v1052, %v1056
    %v1061 = vand.u32 2147483647, %v852
    %vm1062 = vcmp.eq.f32.partialorder %v1061, 8.507059e+37
    %v1063 = vand.u32 %v852, 2147483648
    %v1064 = vor.u32 1.1754944e-38, %v1063
    %v1065 = vsel %vm1062, %v1064, %v1060
    %v1066 = vrcp.pop %v855
    %v1067 = vmul.f32 %v855, %v1066
    %v1068 = vsub.f32 1.0, %v1067
    %v1069 = vmul.f32 %v1066, %v1068
    %v1070 = vadd.f32 %v1066, %v1069
    %vm1071 = vweird.f32 %v855
    %vm1072 = vweird.f32 %v1066
    %vm1073 = vmor %vm1071, %vm1072
    %v1074 = vsel %vm1073, %v1066, %v1070
    %v1075 = vand.u32 2147483647, %v855
    %vm1076 = vcmp.eq.f32.partialorder %v1075, 8.507059e+37
    %v1077 = vand.u32 %v855, 2147483648
    %v1078 = vor.u32 1.1754944e-38, %v1077
    %v1079 = vsel %vm1076, %v1078, %v1074
    %v1080 = vmul.f32 %v777, %v869
    %v1081 = vmul.f32 %v779, %v883
    %v1082 = vmul.f32 %v781, %v897
    %v1083 = vmul.f32 %v783, %v911
    %v1084 = vmul.f32 %v785, %v925
    %v1085 = vmul.f32 %v787, %v939
    %v1086 = vmul.f32 %v789, %v953
    %v1087 = vmul.f32 %v791, %v967
    %v1088 = vmul.f32 %v793, %v981
    %v1089 = vmul.f32 %v795, %v995
    %v1090 = vmul.f32 %v797, %v1009
    %v1091 = vmul.f32 %v799, %v1023
    %v1092 = vmul.f32 %v801, %v1037
    %v1093 = vmul.f32 %v803, %v1051
    %v1094 = vmul.f32 %v805, %v1065
    %v1095 = vmul.f32 %v807, %v1079
    %v1097 = vsel %vm431, %v1080, 0
    %v1100 = vsel %vm431, %v1081, 0
    %1102 = vmatpush.msra.mxu0 0.0
    %1103 = vmatpush.msra.mxu0 0.0
    %1104 = vmatpush.msra.mxu0 0.0
    %1105 = vmatpush.msra.mxu0 0.0
    %1106 = vmatpush.msra.mxu0 0.0
    %1107 = vmatpush.msra.mxu0 0.0
    %1108 = vmatpush.msra.mxu0 0.0
    %1109 = vmatpush.msra.mxu0 0.0
    %1110 = vmatpush.msra.mxu0 0.0
    %1111 = vmatpush.msra.mxu0 0.0
    %1112 = vmatpush.msra.mxu0 0.0
    %1113 = vmatpush.msra.mxu0 0.0
    %1114 = vmatpush.msra.mxu0 0.0
    %1115 = vmatpush.msra.mxu0 0.0
    %1116 = vmatpush.msra.mxu0 %v336
    %1117 = vmatpush.msra.mxu0 %v333
    %1118 = vmatmul.f32.gmra.mxu0 %v1097
    %v1119 = vpop.f32.mrf.mxu0
    %v1120 = vadd.f32 0.0, %v1119
    %1121 = vmatmul.f32.gmra.mxu0 %v1100
    %v1122 = vpop.f32.mrf.mxu0
    %v1123 = vadd.f32 0.0, %v1122
    %1124 = vdwg.mxu0
    %v1126 = vsel %vm431, %v1082, 0
    %v1129 = vsel %vm431, %v1083, 0
    %1131 = vmatpush.msra.mxu0 0.0
    %1132 = vmatpush.msra.mxu0 0.0
    %1133 = vmatpush.msra.mxu0 0.0
    %1134 = vmatpush.msra.mxu0 0.0
    %1135 = vmatpush.msra.mxu0 0.0
    %1136 = vmatpush.msra.mxu0 0.0
    %1137 = vmatpush.msra.mxu0 0.0
    %1138 = vmatpush.msra.mxu0 0.0
    %1139 = vmatpush.msra.mxu0 0.0
    %1140 = vmatpush.msra.mxu0 0.0
    %1141 = vmatpush.msra.mxu0 0.0
    %1142 = vmatpush.msra.mxu0 0.0
    %1143 = vmatpush.msra.mxu0 0.0
    %1144 = vmatpush.msra.mxu0 0.0
    %1145 = vmatpush.msra.mxu0 %v342
    %1146 = vmatpush.msra.mxu0 %v339
    %1147 = vmatmul.f32.gmra.mxu0 %v1126
    %v1148 = vpop.f32.mrf.mxu0
    %v1149 = vadd.f32 0.0, %v1148
    %1150 = vmatmul.f32.gmra.mxu0 %v1129
    %v1151 = vpop.f32.mrf.mxu0
    %v1152 = vadd.f32 0.0, %v1151
    %1153 = vdwg.mxu0
    %v1155 = vsel %vm431, %v1084, 0
    %v1158 = vsel %vm431, %v1085, 0
    %1160 = vmatpush.msra.mxu0 0.0
    %1161 = vmatpush.msra.mxu0 0.0
    %1162 = vmatpush.msra.mxu0 0.0
    %1163 = vmatpush.msra.mxu0 0.0
    %1164 = vmatpush.msra.mxu0 0.0
    %1165 = vmatpush.msra.mxu0 0.0
    %1166 = vmatpush.msra.mxu0 0.0
    %1167 = vmatpush.msra.mxu0 0.0
    %1168 = vmatpush.msra.mxu0 0.0
    %1169 = vmatpush.msra.mxu0 0.0
    %1170 = vmatpush.msra.mxu0 0.0
    %1171 = vmatpush.msra.mxu0 0.0
    %1172 = vmatpush.msra.mxu0 0.0
    %1173 = vmatpush.msra.mxu0 0.0
    %1174 = vmatpush.msra.mxu0 %v365
    %1175 = vmatpush.msra.mxu0 %v362
    %1176 = vmatmul.f32.gmra.mxu0 %v1155
    %v1177 = vpop.f32.mrf.mxu0
    %v1178 = vadd.f32 0.0, %v1177
    %1179 = vmatmul.f32.gmra.mxu0 %v1158
    %v1180 = vpop.f32.mrf.mxu0
    %v1181 = vadd.f32 0.0, %v1180
    %1182 = vdwg.mxu0
    %v1184 = vsel %vm431, %v1086, 0
    %v1187 = vsel %vm431, %v1087, 0
    %1189 = vmatpush.msra.mxu0 0.0
    %1190 = vmatpush.msra.mxu0 0.0
    %1191 = vmatpush.msra.mxu0 0.0
    %1192 = vmatpush.msra.mxu0 0.0
    %1193 = vmatpush.msra.mxu0 0.0
    %1194 = vmatpush.msra.mxu0 0.0
    %1195 = vmatpush.msra.mxu0 0.0
    %1196 = vmatpush.msra.mxu0 0.0
    %1197 = vmatpush.msra.mxu0 0.0
    %1198 = vmatpush.msra.mxu0 0.0
    %1199 = vmatpush.msra.mxu0 0.0
    %1200 = vmatpush.msra.mxu0 0.0
    %1201 = vmatpush.msra.mxu0 0.0
    %1202 = vmatpush.msra.mxu0 0.0
    %1203 = vmatpush.msra.mxu0 %v371
    %1204 = vmatpush.msra.mxu0 %v368
    %1205 = vmatmul.f32.gmra.mxu0 %v1184
    %v1206 = vpop.f32.mrf.mxu0
    %v1207 = vadd.f32 0.0, %v1206
    %1208 = vmatmul.f32.gmra.mxu0 %v1187
    %v1209 = vpop.f32.mrf.mxu0
    %v1210 = vadd.f32 0.0, %v1209
    %1211 = vdwg.mxu0
    %v1213 = vsel %vm431, %v1088, 0
    %v1216 = vsel %vm431, %v1089, 0
    %1218 = vmatpush.msra.mxu0 0.0
    %1219 = vmatpush.msra.mxu0 0.0
    %1220 = vmatpush.msra.mxu0 0.0
    %1221 = vmatpush.msra.mxu0 0.0
    %1222 = vmatpush.msra.mxu0 0.0
    %1223 = vmatpush.msra.mxu0 0.0
    %1224 = vmatpush.msra.mxu0 0.0
    %1225 = vmatpush.msra.mxu0 0.0
    %1226 = vmatpush.msra.mxu0 0.0
    %1227 = vmatpush.msra.mxu0 0.0
    %1228 = vmatpush.msra.mxu0 0.0
    %1229 = vmatpush.msra.mxu0 0.0
    %1230 = vmatpush.msra.mxu0 0.0
    %1231 = vmatpush.msra.mxu0 0.0
    %1232 = vmatpush.msra.mxu0 %v394
    %1233 = vmatpush.msra.mxu0 %v391
    %1234 = vmatmul.f32.gmra.mxu0 %v1213
    %v1235 = vpop.f32.mrf.mxu0
    %v1236 = vadd.f32 0.0, %v1235
    %1237 = vmatmul.f32.gmra.mxu0 %v1216
    %v1238 = vpop.f32.mrf.mxu0
    %v1239 = vadd.f32 0.0, %v1238
    %1240 = vdwg.mxu0
    %v1242 = vsel %vm431, %v1090, 0
    %v1245 = vsel %vm431, %v1091, 0
    %1247 = vmatpush.msra.mxu0 0.0
    %1248 = vmatpush.msra.mxu0 0.0
    %1249 = vmatpush.msra.mxu0 0.0
    %1250 = vmatpush.msra.mxu0 0.0
    %1251 = vmatpush.msra.mxu0 0.0
    %1252 = vmatpush.msra.mxu0 0.0
    %1253 = vmatpush.msra.mxu0 0.0
    %1254 = vmatpush.msra.mxu0 0.0
    %1255 = vmatpush.msra.mxu0 0.0
    %1256 = vmatpush.msra.mxu0 0.0
    %1257 = vmatpush.msra.mxu0 0.0
    %1258 = vmatpush.msra.mxu0 0.0
    %1259 = vmatpush.msra.mxu0 0.0
    %1260 = vmatpush.msra.mxu0 0.0
    %1261 = vmatpush.msra.mxu0 %v400
    %1262 = vmatpush.msra.mxu0 %v397
    %1263 = vmatmul.f32.gmra.mxu0 %v1242
    %v1264 = vpop.f32.mrf.mxu0
    %v1265 = vadd.f32 0.0, %v1264
    %1266 = vmatmul.f32.gmra.mxu0 %v1245
    %v1267 = vpop.f32.mrf.mxu0
    %v1268 = vadd.f32 0.0, %v1267
    %1269 = vdwg.mxu0
    %v1271 = vsel %vm431, %v1092, 0
    %v1274 = vsel %vm431, %v1093, 0
    %1276 = vmatpush.msra.mxu0 0.0
    %1277 = vmatpush.msra.mxu0 0.0
    %1278 = vmatpush.msra.mxu0 0.0
    %1279 = vmatpush.msra.mxu0 0.0
    %1280 = vmatpush.msra.mxu0 0.0
    %1281 = vmatpush.msra.mxu0 0.0
    %1282 = vmatpush.msra.mxu0 0.0
    %1283 = vmatpush.msra.mxu0 0.0
    %1284 = vmatpush.msra.mxu0 0.0
    %1285 = vmatpush.msra.mxu0 0.0
    %1286 = vmatpush.msra.mxu0 0.0
    %1287 = vmatpush.msra.mxu0 0.0
    %1288 = vmatpush.msra.mxu0 0.0
    %1289 = vmatpush.msra.mxu0 0.0
    %1290 = vmatpush.msra.mxu0 %v423
    %1291 = vmatpush.msra.mxu0 %v420
    %1292 = vmatmul.f32.gmra.mxu0 %v1271
    %v1293 = vpop.f32.mrf.mxu0
    %v1294 = vadd.f32 0.0, %v1293
    %1295 = vmatmul.f32.gmra.mxu0 %v1274
    %v1296 = vpop.f32.mrf.mxu0
    %v1297 = vadd.f32 0.0, %v1296
    %1298 = vdwg.mxu0
    %v1300 = vsel %vm431, %v1094, 0
    %v1303 = vsel %vm431, %v1095, 0
    %1305 = vmatpush.msra.mxu0 0.0
    %1306 = vmatpush.msra.mxu0 0.0
    %1307 = vmatpush.msra.mxu0 0.0
    %1308 = vmatpush.msra.mxu0 0.0
    %1309 = vmatpush.msra.mxu0 0.0
    %1310 = vmatpush.msra.mxu0 0.0
    %1311 = vmatpush.msra.mxu0 0.0
    %1312 = vmatpush.msra.mxu0 0.0
    %1313 = vmatpush.msra.mxu0 0.0
    %1314 = vmatpush.msra.mxu0 0.0
    %1315 = vmatpush.msra.mxu0 0.0
    %1316 = vmatpush.msra.mxu0 0.0
    %1317 = vmatpush.msra.mxu0 0.0
    %1318 = vmatpush.msra.mxu0 0.0
    %1319 = vmatpush.msra.mxu0 %v429
    %1320 = vmatpush.msra.mxu0 %v426
    %1321 = vmatmul.f32.gmra.mxu0 %v1300
    %v1322 = vpop.f32.mrf.mxu0
    %v1323 = vadd.f32 0.0, %v1322
    %1324 = vmatmul.f32.gmra.mxu0 %v1303
    %v1325 = vpop.f32.mrf.mxu0
    %v1326 = vadd.f32 0.0, %v1325
    %1327 = vdwg.mxu0
    %v1328 = vld [vmem:[%s2] sm:$0xff]
    %v1329 = vld [vmem:[%s2 + $0x8] sm:$0xff]
    %v1330 = vld [vmem:[%s2 + $0x10] sm:$0xff]
    %v1331 = vld [vmem:[%s2 + $0x18] sm:$0xff]
    %v1332 = vld [vmem:[%s2 + $0x20] sm:$0xff]
    %v1333 = vld [vmem:[%s2 + $0x28] sm:$0xff]
    %v1334 = vld [vmem:[%s2 + $0x30] sm:$0xff]
    %v1335 = vld [vmem:[%s2 + $0x38] sm:$0xff]
    %v1337 = vsel %vm431, %v1120, 0
    %v1340 = vsel %vm431, %v1123, 0
    %v1343 = vsel %vm431, %v1149, 0
    %v1346 = vsel %vm431, %v1152, 0
    %1348 = vmatpush.msra.mxu0 0.0
    %1349 = vmatpush.msra.mxu0 0.0
    %1350 = vmatpush.msra.mxu0 0.0
    %1351 = vmatpush.msra.mxu0 0.0
    %1352 = vmatpush.msra.mxu0 0.0
    %1353 = vmatpush.msra.mxu0 0.0
    %1354 = vmatpush.msra.mxu0 0.0
    %1355 = vmatpush.msra.mxu0 0.0
    %1356 = vmatpush.msra.mxu0 0.0
    %1357 = vmatpush.msra.mxu0 0.0
    %1358 = vmatpush.msra.mxu0 0.0
    %1359 = vmatpush.msra.mxu0 0.0
    %1360 = vmatpush.msra.mxu0 0.0
    %1361 = vmatpush.msra.mxu0 0.0
    %1362 = vmatpush.msra.mxu0 %v1329
    %1363 = vmatpush.msra.mxu0 %v1328
    %1364 = vmatmul.f32.gmra.mxu0 %v1337
    %v1365 = vpop.f32.mrf.mxu0
    %v1366 = vadd.f32 0.0, %v1365
    %1367 = vmatmul.f32.gmra.mxu0 %v1340
    %v1368 = vpop.f32.mrf.mxu0
    %v1369 = vadd.f32 0.0, %v1368
    %1370 = vmatmul.f32.gmra.mxu0 %v1343
    %v1371 = vpop.f32.mrf.mxu0
    %v1372 = vadd.f32 0.0, %v1371
    %1373 = vmatmul.f32.gmra.mxu0 %v1346
    %v1374 = vpop.f32.mrf.mxu0
    %v1375 = vadd.f32 0.0, %v1374
    %1376 = vdwg.mxu0
    %v1378 = vsel %vm431, %v1178, 0
    %v1381 = vsel %vm431, %v1181, 0
    %v1384 = vsel %vm431, %v1207, 0
    %v1387 = vsel %vm431, %v1210, 0
    %1389 = vmatpush.msra.mxu0 0.0
    %1390 = vmatpush.msra.mxu0 0.0
    %1391 = vmatpush.msra.mxu0 0.0
    %1392 = vmatpush.msra.mxu0 0.0
    %1393 = vmatpush.msra.mxu0 0.0
    %1394 = vmatpush.msra.mxu0 0.0
    %1395 = vmatpush.msra.mxu0 0.0
    %1396 = vmatpush.msra.mxu0 0.0
    %1397 = vmatpush.msra.mxu0 0.0
    %1398 = vmatpush.msra.mxu0 0.0
    %1399 = vmatpush.msra.mxu0 0.0
    %1400 = vmatpush.msra.mxu0 0.0
    %1401 = vmatpush.msra.mxu0 0.0
    %1402 = vmatpush.msra.mxu0 0.0
    %1403 = vmatpush.msra.mxu0 %v1331
    %1404 = vmatpush.msra.mxu0 %v1330
    %1405 = vmatmul.f32.gmra.mxu0 %v1378
    %v1406 = vpop.f32.mrf.mxu0
    %v1407 = vadd.f32 0.0, %v1406
    %1408 = vmatmul.f32.gmra.mxu0 %v1381
    %v1409 = vpop.f32.mrf.mxu0
    %v1410 = vadd.f32 0.0, %v1409
    %1411 = vmatmul.f32.gmra.mxu0 %v1384
    %v1412 = vpop.f32.mrf.mxu0
    %v1413 = vadd.f32 0.0, %v1412
    %1414 = vmatmul.f32.gmra.mxu0 %v1387
    %v1415 = vpop.f32.mrf.mxu0
    %v1416 = vadd.f32 0.0, %v1415
    %1417 = vdwg.mxu0
    %v1419 = vsel %vm431, %v1236, 0
    %v1422 = vsel %vm431, %v1239, 0
    %v1425 = vsel %vm431, %v1265, 0
    %v1428 = vsel %vm431, %v1268, 0
    %1430 = vmatpush.msra.mxu0 0.0
    %1431 = vmatpush.msra.mxu0 0.0
    %1432 = vmatpush.msra.mxu0 0.0
    %1433 = vmatpush.msra.mxu0 0.0
    %1434 = vmatpush.msra.mxu0 0.0
    %1435 = vmatpush.msra.mxu0 0.0
    %1436 = vmatpush.msra.mxu0 0.0
    %1437 = vmatpush.msra.mxu0 0.0
    %1438 = vmatpush.msra.mxu0 0.0
    %1439 = vmatpush.msra.mxu0 0.0
    %1440 = vmatpush.msra.mxu0 0.0
    %1441 = vmatpush.msra.mxu0 0.0
    %1442 = vmatpush.msra.mxu0 0.0
    %1443 = vmatpush.msra.mxu0 0.0
    %1444 = vmatpush.msra.mxu0 %v1333
    %1445 = vmatpush.msra.mxu0 %v1332
    %1446 = vmatmul.f32.gmra.mxu0 %v1419
    %v1447 = vpop.f32.mrf.mxu0
    %v1448 = vadd.f32 0.0, %v1447
    %1449 = vmatmul.f32.gmra.mxu0 %v1422
    %v1450 = vpop.f32.mrf.mxu0
    %v1451 = vadd.f32 0.0, %v1450
    %1452 = vmatmul.f32.gmra.mxu0 %v1425
    %v1453 = vpop.f32.mrf.mxu0
    %v1454 = vadd.f32 0.0, %v1453
    %1455 = vmatmul.f32.gmra.mxu0 %v1428
    %v1456 = vpop.f32.mrf.mxu0
    %v1457 = vadd.f32 0.0, %v1456
    %1458 = vdwg.mxu0
    %v1460 = vsel %vm431, %v1294, 0
    %v1463 = vsel %vm431, %v1297, 0
    %v1466 = vsel %vm431, %v1323, 0
    %v1469 = vsel %vm431, %v1326, 0
    %1471 = vmatpush.msra.mxu0 0.0
    %1472 = vmatpush.msra.mxu0 0.0
    %1473 = vmatpush.msra.mxu0 0.0
    %1474 = vmatpush.msra.mxu0 0.0
    %1475 = vmatpush.msra.mxu0 0.0
    %1476 = vmatpush.msra.mxu0 0.0
    %1477 = vmatpush.msra.mxu0 0.0
    %1478 = vmatpush.msra.mxu0 0.0
    %1479 = vmatpush.msra.mxu0 0.0
    %1480 = vmatpush.msra.mxu0 0.0
    %1481 = vmatpush.msra.mxu0 0.0
    %1482 = vmatpush.msra.mxu0 0.0
    %1483 = vmatpush.msra.mxu0 0.0
    %1484 = vmatpush.msra.mxu0 0.0
    %1485 = vmatpush.msra.mxu0 %v1335
    %1486 = vmatpush.msra.mxu0 %v1334
    %1487 = vmatmul.f32.gmra.mxu0 %v1460
    %v1488 = vpop.f32.mrf.mxu0
    %v1489 = vadd.f32 0.0, %v1488
    %1490 = vmatmul.f32.gmra.mxu0 %v1463
    %v1491 = vpop.f32.mrf.mxu0
    %v1492 = vadd.f32 0.0, %v1491
    %1493 = vmatmul.f32.gmra.mxu0 %v1466
    %v1494 = vpop.f32.mrf.mxu0
    %v1495 = vadd.f32 0.0, %v1494
    %1496 = vmatmul.f32.gmra.mxu0 %v1469
    %v1497 = vpop.f32.mrf.mxu0
    %v1498 = vadd.f32 0.0, %v1497
    %1499 = vdwg.mxu0
    %v1500 = vsel %vm70, %v1366, 0.0
    %v1501 = vsel %vm70, %v1407, 0.0
    %v1502 = vadd.f32 %v1500, %v1501
    %v1503 = vsel %vm70, %v1448, 0.0
    %v1504 = vadd.f32 %v1502, %v1503
    %v1505 = vsel %vm70, %v1489, 0.0
    %v1506 = vadd.f32 %v1504, %v1505
    %v1507 = vsel %vm70, %v1369, 0.0
    %v1508 = vsel %vm70, %v1410, 0.0
    %v1509 = vadd.f32 %v1507, %v1508
    %v1510 = vsel %vm70, %v1451, 0.0
    %v1511 = vadd.f32 %v1509, %v1510
    %v1512 = vsel %vm70, %v1492, 0.0
    %v1513 = vadd.f32 %v1511, %v1512
    %v1514 = vsel %vm70, %v1372, 0.0
    %v1515 = vsel %vm70, %v1413, 0.0
    %v1516 = vadd.f32 %v1514, %v1515
    %v1517 = vsel %vm70, %v1454, 0.0
    %v1518 = vadd.f32 %v1516, %v1517
    %v1519 = vsel %vm70, %v1495, 0.0
    %v1520 = vadd.f32 %v1518, %v1519
    %v1521 = vsel %vm70, %v1375, 0.0
    %v1522 = vsel %vm70, %v1416, 0.0
    %v1523 = vadd.f32 %v1521, %v1522
    %v1524 = vsel %vm70, %v1457, 0.0
    %v1525 = vadd.f32 %v1523, %v1524
    %v1526 = vsel %vm70, %v1498, 0.0
    %v1527 = vadd.f32 %v1525, %v1526
    %v1528 = vld [vmem:[%s3] sm:$0x1]
    %v1530 = vperm.slane %v1528, 0
    %v1532 = vadd.f32 %v1506, %v1530
    %v1533 = vadd.f32 %v1513, %v1530
    %v1534 = vadd.f32 %v1520, %v1530
    %v1535 = vadd.f32 %v1527, %v1530
    %1536 = vst.msk [vmem:[#allocation2] sm:$0xff] %vm70, %v1532
    %1537 = vst.msk [vmem:[#allocation2 + $0x8] sm:$0xff] %vm70, %v1533
    %1538 = vst.msk [vmem:[#allocation2 + $0x10] sm:$0xff] %vm70, %v1534
    %1539 = vst.msk [vmem:[#allocation2 + $0x18] sm:$0xff] %vm70, %v1535
    // Predicated region
    $region18: #{tpu_custom_call.1} parent=1 // pred_check
      _
    $region19: #{tpu_custom_call.1} parent=1 // pred_check_branch
      %1541 = sbr.rel (0) target = $region21
    $region20: #{tpu_custom_call.1} parent=1 // pred_region
      %1543 = vsyncadd [#allocation3], 0
      %s1544 = sshll.u32 [#allocation2], 4
      %s1545 = int_to_ptr.vmem [resolvable:$true] %s1544
      %s1546 = sshll.u32 %s4, 4
      %s1547 = int_to_ptr.hbm [resolvable:$true] %s1546
      %1552 = dma.vmem_to_hbm [thread:$0]  %s1545, 512, %s1547, [#allocation3], 128, 128, 8
    $region21: #{tpu_custom_call.1} parent=1 // pred_fallthru
      _
    // Predicated region
    $region22: #{tpu_custom_call.1} parent=1 // pred_check
      _
    $region23: #{tpu_custom_call.1} parent=1 // pred_check_branch
      %1554 = sbr.rel (0) target = $region25
    $region24: #{tpu_custom_call.1} parent=1 // pred_region
      %1556 = dma.done [#allocation3], 512
    $region25: #{tpu_custom_call.1} parent=1 // pred_fallthru
      _
    %1557 = vsyncpa [#allocation3], 1

</llo_original>
